<compile_context>
chip_gen: v6e
topology: v6e:2x2x1
jax: 0.10.0
libtpu: 0.0.40
codegen_flags: <defaults>
</compile_context>

<pallas_src>
import functools

import jax
import jax.numpy as jnp
import numpy as np
from jax.experimental import pallas as pl
from jax.experimental.pallas import tpu as pltpu

_LANE = 128
_SUBLANE = 8
_MAX_TD = 32768  # cap lane-tile width (review: 4096-32768 range)


# ---------------------------------------------------------------------------
# Kernels
# ---------------------------------------------------------------------------
def _mse_rowsum_kernel(pred_ref, gt_ref, out_ref, acc_ref, *,
                       valid_d, block_d, mask_needed, lane_chunks):
    """Accumulates sum((pred-gt)^2) per row over the tiled reduction axis.

    Grid: (row_blocks, lane_blocks); lane axis (program_id(1)) is the reduction.
    pred_ref/gt_ref: (TR, TD) VMEM blocks.
    out_ref:         (TR, 1) output block (same block across the lane axis).
    acc_ref:         (TR, 128) f32 VMEM scratch of per-lane partial sums.
    """
    k = pl.program_id(1)

    @pl.when(k == 0)
    def _():
        acc_ref[...] = jnp.zeros_like(acc_ref)

    diff = pred_ref[...].astype(jnp.float32) - gt_ref[...].astype(jnp.float32)
    sq = diff * diff

    if mask_needed:
        # Ragged last lane tile: zero out-of-range columns (2-D iota; the
        # garbage values from the OOB part of the block are never selected).
        col = k * block_d + jax.lax.broadcasted_iota(jnp.int32, sq.shape, 1)
        sq = jnp.where(col < valid_d, sq, 0.0)

    if lane_chunks > 0:
        # Pairwise-tree accumulate 128-wide lane chunks on the VPU; keeps the
        # cross-lane (XLU) reduction out of the inner loop.
        chunks = [sq[:, c * _LANE:(c + 1) * _LANE] for c in range(lane_chunks)]
        while len(chunks) > 1:
            nxt = [a + b for a, b in zip(chunks[::2], chunks[1::2])]
            if len(chunks) % 2:
                nxt.append(chunks[-1])
            chunks = nxt
        acc_ref[...] += chunks[0]
    else:
        # Lane width not a multiple of 128 (single narrow tile) — direct reduce.
        acc_ref[:, :1] += jnp.sum(sq, axis=1, keepdims=True)

    @pl.when(k == pl.num_programs(1) - 1)
    def _():
        out_ref[...] = jnp.sum(acc_ref[...], axis=1, keepdims=True)


def _sq_diff_kernel(pred_ref, gt_ref, out_ref):
    """Elementwise squared difference (the reduction='none' path)."""
    diff = pred_ref[...] - gt_ref[...]
    out_ref[...] = (diff * diff).astype(out_ref.dtype)


# ---------------------------------------------------------------------------
# Tiling heuristics
# ---------------------------------------------------------------------------
def _pick_split(n, d, max_split=64):
    """Row-split factor S so (n, d) is viewed as (n*S, d//S) with good sublane
    packing (rows a multiple of 8 when possible)."""
    for s in range(1, max_split + 1):
        if d % s == 0 and (n * s) % _SUBLANE == 0:
            return s
    for s in range(1, max_split + 1):
        if d % s == 0 and n * s >= _SUBLANE:
            return s
    return 1


def _pick_blocks(r, dr, itemsize, block_bytes):
    """Choose a (TR, TD) block with TR*TD*itemsize ~<= block_bytes.

    TR is a multiple of 8 (or the full row count), TD is a multiple of 128
    (or the full lane count), so the (8,128) BlockSpec constraint holds.
    """
    max_elems = max(block_bytes // itemsize, _SUBLANE * _LANE)
    if r * dr <= max_elems and dr <= _MAX_TD:
        return r, dr  # whole array in a single block
    if dr <= _MAX_TD and dr * _SUBLANE <= max_elems:
        td = dr
    else:
        td = min(_MAX_TD, max(_LANE, (max_elems // _SUBLANE) // _LANE * _LANE))
    tr = max(_SUBLANE, (max_elems // td) // _SUBLANE * _SUBLANE)
    tr = min(tr, r)
    return tr, td


# ---------------------------------------------------------------------------
# Wrapper (glue: reshape only; no padding copies — hot path is in the kernels)
# ---------------------------------------------------------------------------
def flaw_detector_criterion(pred, gt, is_ssl=False, reduction=True,
                            block_bytes=2 * 1024 * 1024):
    """JAX/Pallas equivalent of FlawDetectorCriterion.forward.

    pred, gt: (N, C, H, W) float arrays (NCHW, same as PyTorch).
    Returns (N,) if reduction=True else (N, C, H, W).
    """
    assert pred.shape == gt.shape and pred.ndim == 4
    n, c, h, w = pred.shape
    d = c * h * w
    itemsize = jnp.dtype(pred.dtype).itemsize

    # Sublane-packing view: (N, D) -> (N*S, D//S); pure row-major view, free.
    s = _pick_split(n, d)
    r, dr = n * s, d // s
    p2 = pred.reshape(r, dr)
    g2 = gt.reshape(r, dr)

    tr, td = _pick_blocks(r, dr, itemsize, block_bytes)
    grid_r = pl.cdiv(r, tr)
    grid_d = pl.cdiv(dr, td)

    if not reduction:
        out = pl.pallas_call(
            _sq_diff_kernel,
            out_shape=jax.ShapeDtypeStruct((r, dr), pred.dtype),
            grid_spec=pltpu.PrefetchScalarGridSpec(
                num_scalar_prefetch=0,
                grid=(grid_r, grid_d),
                in_specs=[
                    pl.BlockSpec((tr, td), lambda i, k: (i, k)),
                    pl.BlockSpec((tr, td), lambda i, k: (i, k)),
                ],
                out_specs=pl.BlockSpec((tr, td), lambda i, k: (i, k)),
            ),
            compiler_params=pltpu.CompilerParams(
                dimension_semantics=("parallel", "parallel"),
                vmem_limit_bytes=32 * 1024 * 1024,
            ),
        )(p2, g2)
        return out.reshape(n, c, h, w)

    mask_needed = (dr % td) != 0
    lane_chunks = td // _LANE if td % _LANE == 0 else 0
    kernel = functools.partial(
        _mse_rowsum_kernel,
        valid_d=dr, block_d=td,
        mask_needed=mask_needed, lane_chunks=lane_chunks,
    )

    row_sums = pl.pallas_call(
        kernel,
        out_shape=jax.ShapeDtypeStruct((r, 1), jnp.float32),
        grid_spec=pltpu.PrefetchScalarGridSpec(
            num_scalar_prefetch=0,
            grid=(grid_r, grid_d),
            in_specs=[
                pl.BlockSpec((tr, td), lambda i, k: (i, k)),
                pl.BlockSpec((tr, td), lambda i, k: (i, k)),
            ],
            out_specs=pl.BlockSpec((tr, 1), lambda i, k: (i, 0)),
            scratch_shapes=[pltpu.VMEM((tr, _LANE), jnp.float32)],
        ),
        compiler_params=pltpu.CompilerParams(
            dimension_semantics=("parallel", "arbitrary"),
            vmem_limit_bytes=32 * 1024 * 1024,
        ),
    )(p2, g2)

    # Tiny grouped-row reduce (N*S scalars) + mean scaling; negligible XLA op.
    per_sample = row_sums.reshape(n, s).sum(axis=1) * (1.0 / float(d))
    return per_sample.astype(pred.dtype)


# ---------------------------------------------------------------------------
# Demo / self-check
# ---------------------------------------------------------------------------
if __name__ == "__main__":
    key = jax.random.PRNGKey(0)
    k_pred, k_gt = jax.random.split(key)

    # Small shapes consistent with the flaw-detector: N=2, C=4, H=W=16 (NCHW).
    pred = jax.random.normal(k_pred, (2, 4, 16, 16), dtype=jnp.float32)
    gt = jax.random.normal(k_gt, (2, 4, 16, 16), dtype=jnp.float32)

    # reduction=True path (the default forward)
    loss = flaw_detector_criterion(pred, gt, reduction=True)
    loss = jax.block_until_ready(loss)

    # reduction=False path (elementwise MSE map)
    loss_map = flaw_detector_criterion(pred, gt, reduction=False)
    loss_map = jax.block_until_ready(loss_map)

    # Reference (plain JAX, mirrors F.mse_loss + torch.mean(dim=(1,2,3)))
    ref_map = (pred - gt) ** 2
    ref_loss = jnp.mean(ref_map, axis=(1, 2, 3))

    assert loss.shape == (2,)
    assert loss_map.shape == pred.shape
    assert np.allclose(np.asarray(loss), np.asarray(ref_loss), rtol=1e-5, atol=1e-6)
    assert np.allclose(np.asarray(loss_map), np.asarray(ref_map), rtol=1e-5, atol=1e-6)

    print("KERNEL_OK")
</pallas_src>

<mosaic_0001>
module attributes {stable_mosaic.version = 11 : i64} {
  func.func @_mse_rowsum_kernel(%arg0: i32, %arg1: i32, %arg2: memref<8x256xf32, #tpu.memory_space<vmem>>, %arg3: memref<8x256xf32, #tpu.memory_space<vmem>>, %arg4: memref<8x1xf32, #tpu.memory_space<vmem>>, %arg5: memref<8x128xf32, #tpu.memory_space<vmem>>) attributes {dimension_semantics = [#tpu.dimension_semantics<parallel>, #tpu.dimension_semantics<arbitrary>], iteration_bounds = array<i64: 1, 1>, scalar_prefetch = 0 : i64, scratch_operands = 1 : i64, tpu.core_type = #tpu.core_type<tc>, window_params = [{transform_indices = @transform_0, window_bounds = array<i64: 8, 256>}, {transform_indices = @transform_1, window_bounds = array<i64: 8, 256>}, {transform_indices = @transform_2, window_bounds = array<i64: 8, 1>}]} {
    %c0_i32 = arith.constant 0 : i32
    %0 = arith.cmpi eq, %arg1, %c0_i32 : i32
    %1 = arith.extui %0 : i1 to i32
    %c0_i32_0 = arith.constant 0 : i32
    %2 = arith.cmpi ne, %1, %c0_i32_0 : i32
    scf.if %2 {
      %cst = arith.constant 0.000000e+00 : f32
      %16 = vector.broadcast %cst : f32 to vector<8x128xf32>
      %c0_10 = arith.constant 0 : index
      %c0_11 = arith.constant 0 : index
      %17 = vector.load %arg5[%c0_10, %c0_11] : memref<8x128xf32, #tpu.memory_space<vmem>>, vector<8x128xf32>
      tpu.vector_store %arg5[%c0_10, %c0_11], %16 {strides = array<i32>} : memref<8x128xf32, #tpu.memory_space<vmem>>, vector<8x128xf32>,
    } else {
    }
    %c0 = arith.constant 0 : index
    %c0_1 = arith.constant 0 : index
    %3 = vector.load %arg2[%c0, %c0_1] : memref<8x256xf32, #tpu.memory_space<vmem>>, vector<8x256xf32>
    %c0_2 = arith.constant 0 : index
    %c0_3 = arith.constant 0 : index
    %4 = vector.load %arg3[%c0_2, %c0_3] : memref<8x256xf32, #tpu.memory_space<vmem>>, vector<8x256xf32>
    %5 = arith.subf %3, %4 : vector<8x256xf32>
    %6 = arith.mulf %5, %5 : vector<8x256xf32>
    %7 = vector.extract_strided_slice %6 {offsets = [0, 0], sizes = [8, 128], strides = [1, 1]} : vector<8x256xf32> to vector<8x128xf32>
    %8 = vector.extract_strided_slice %6 {offsets = [0, 128], sizes = [8, 128], strides = [1, 1]} : vector<8x256xf32> to vector<8x128xf32>
    %9 = arith.addf %7, %8 : vector<8x128xf32>
    %c0_4 = arith.constant 0 : index
    %c0_5 = arith.constant 0 : index
    %10 = vector.load %arg5[%c0_4, %c0_5] : memref<8x128xf32, #tpu.memory_space<vmem>>, vector<8x128xf32>
    %11 = arith.addf %10, %9 : vector<8x128xf32>
    %c0_6 = arith.constant 0 : index
    %c0_7 = arith.constant 0 : index
    %12 = vector.load %arg5[%c0_6, %c0_7] : memref<8x128xf32, #tpu.memory_space<vmem>>, vector<8x128xf32>
    tpu.vector_store %arg5[%c0_6, %c0_7], %11 {strides = array<i32>} : memref<8x128xf32, #tpu.memory_space<vmem>>, vector<8x128xf32>,
    %c0_i32_8 = arith.constant 0 : i32
    %13 = arith.cmpi eq, %arg1, %c0_i32_8 : i32
    %14 = arith.extui %13 : i1 to i32
    %c0_i32_9 = arith.constant 0 : i32
    %15 = arith.cmpi ne, %14, %c0_i32_9 : i32
    scf.if %15 {
      %c0_10 = arith.constant 0 : index
      %c0_11 = arith.constant 0 : index
      %16 = vector.load %arg5[%c0_10, %c0_11] : memref<8x128xf32, #tpu.memory_space<vmem>>, vector<8x128xf32>
      %cst = arith.constant dense<0.000000e+00> : vector<8xf32>
      %17 = vector.multi_reduction <add>, %16, %cst [1] : vector<8x128xf32> to vector<8xf32>
      %18 = vector.shape_cast %17 : vector<8xf32> to vector<8x1xf32>
      %c0_12 = arith.constant 0 : index
      %c0_13 = arith.constant 0 : index
      %19 = vector.load %arg4[%c0_12, %c0_13] : memref<8x1xf32, #tpu.memory_space<vmem>>, vector<8x1xf32>
      tpu.vector_store %arg4[%c0_12, %c0_13], %18 {strides = array<i32>} : memref<8x1xf32, #tpu.memory_space<vmem>>, vector<8x1xf32>,
    } else {
    }
    return
  }
  func.func @transform_0(%arg0: i32, %arg1: i32) -> (i32, i32) {
    %c0_i32 = arith.constant 0 : i32
    return %arg0, %arg1 : i32, i32
  }
  func.func @transform_1(%arg0: i32, %arg1: i32) -> (i32, i32) {
    %c0_i32 = arith.constant 0 : i32
    return %arg0, %arg1 : i32, i32
  }
  func.func @transform_2(%arg0: i32, %arg1: i32) -> (i32, i32) {
    %c0_i32 = arith.constant 0 : i32
    %c0_i32_0 = arith.constant 0 : i32
    return %arg0, %c0_i32 : i32, i32
  }
}

</mosaic_0001>

<llo_original>
// kernel: tpu_custom_call.1
$region0: #{tpu_custom_call.1}
  #allocation0 [shape = 'u32[]', space=smem, size = 0x4, offset = 0x4, fixed_abs, tag = 'smem constant byte address 0x4 - core index']
  #allocation1 [shape = 'u32[144,128]{1,0:T(1,128)}', space=vmem, size = 0x12000, scoped, tag = 'internal scratch']
  #allocation2 [shape = 'f32[8,128]{1,0:T(8,128)}', space=vmem, size = 0x1000, scoped, tag = 'scratch operand']
  %s0 = inlined_call_operand.hbm [shape: f32[8,256], index: 0, kind: input, shape index: {}]
  %s1 = inlined_call_operand.hbm [shape: f32[8,256], index: 1, kind: input, shape index: {}]
  %s2 = inlined_call_operand.vmem [shape: f32[8,1], index: 2, kind: output, shape index: {}]
  %s3 = sld [smem:[#allocation0]]
  $region34: #{tpu_custom_call.1} parent=0
    _
  %s5 = ssub.s32 1, %s3
  %s6 = scalar_select 0, %s5, %s3
  $region1: #{tpu_custom_call.1} parent=0
    #allocation3 [shape = 'u8[8192]{0}', space=vmem, size = 0x2000, scoped, tag = 'input window, operand 0, single buffered']
    #allocation4 [shape = 's32[1]{0}', space=sflag, size = 0x4, scoped, tag = 'scoped memory for tpu_custom_call.1']
    #allocation5 [shape = 'u8[8192]{0}', space=vmem, size = 0x2000, scoped, tag = 'input window, operand 1, single buffered']
    #allocation6 [shape = 's32[1]{0}', space=sflag, size = 0x4, scoped, tag = 'scoped memory for tpu_custom_call.1']
    %7 = vsyncpa [#allocation4], 0
    %8 = vsyncpa [#allocation6], 0
    // Predicated region
    $region2: #{tpu_custom_call.1} parent=1 // pred_check
      _
    $region3: #{tpu_custom_call.1} parent=1 // pred_check_branch
      %10 = sbr.rel (0) target = $region5
    $region4: #{tpu_custom_call.1} parent=1 // pred_region
      %s12 = ssub.s32 256, 256
      %13 = vsyncadd [#allocation4], %s12
      %s15 = sshll.u32 [#allocation3], 4
      %s16 = int_to_ptr.vmem [resolvable:$true] %s15
      %18 = dma.hbm_to_vmem [thread:$0]  %s0, 256, %s16, [#allocation4]
    $region5: #{tpu_custom_call.1} parent=1 // pred_fallthru
      _
    // Predicated region
    $region6: #{tpu_custom_call.1} parent=1 // pred_check
      _
    $region7: #{tpu_custom_call.1} parent=1 // pred_check_branch
      %20 = sbr.rel (0) target = $region9
    $region8: #{tpu_custom_call.1} parent=1 // pred_region
      %s22 = ssub.s32 256, 256
      %23 = vsyncadd [#allocation6], %s22
      %s25 = sshll.u32 [#allocation5], 4
      %s26 = int_to_ptr.vmem [resolvable:$true] %s25
      %28 = dma.hbm_to_vmem [thread:$0]  %s1, 256, %s26, [#allocation6]
    $region9: #{tpu_custom_call.1} parent=1 // pred_fallthru
      _
    // Predicated region
    $region10: #{tpu_custom_call.1} parent=1 // pred_check
      _
    $region11: #{tpu_custom_call.1} parent=1 // pred_check_branch
      %30 = sbr.rel (0) target = $region13
    $region12: #{tpu_custom_call.1} parent=1 // pred_region
      %31 = dma.done [#allocation4], 256
    $region13: #{tpu_custom_call.1} parent=1 // pred_fallthru
      _
    // Predicated region
    $region14: #{tpu_custom_call.1} parent=1 // pred_check
      _
    $region15: #{tpu_custom_call.1} parent=1 // pred_check_branch
      %33 = sbr.rel (0) target = $region17
    $region16: #{tpu_custom_call.1} parent=1 // pred_region
      %34 = dma.done [#allocation6], 256
    $region17: #{tpu_custom_call.1} parent=1 // pred_fallthru
      _
    %p35 = scmp.eq.s32.totalorder 0, 0
    // Predicated region
    $region18: #{tpu_custom_call.1} parent=1 // pred_check
      %p36 = pneg %p35
    $region19: #{tpu_custom_call.1} parent=1 // pred_check_branch
      %38 = sbr.rel (%p36) target = $region21
    $region20: #{tpu_custom_call.1} parent=1 // pred_region
      %39 = vst [vmem:[#allocation2] sm:$0xff] 0.0
    $region21: #{tpu_custom_call.1} parent=1 // pred_fallthru
      _
    %v40 = vld [vmem:[#allocation3] sm:$0xff]
    %v41 = vld [vmem:[#allocation3 + $0x8] sm:$0xff]
    %v42 = vld [vmem:[#allocation5] sm:$0xff]
    %v43 = vld [vmem:[#allocation5 + $0x8] sm:$0xff]
    %v44 = vsub.f32 %v40, %v42
    %v45 = vsub.f32 %v41, %v43
    %v46 = vmul.f32 %v44, %v44
    %v47 = vmul.f32 %v45, %v45
    %v48 = vadd.f32 %v46, %v47
    %v49 = vld [vmem:[#allocation2] sm:$0xff]
    %v50 = vadd.f32 %v49, %v48
    %51 = vst [vmem:[#allocation2] sm:$0xff] %v50
    // Predicated region
    $region22: #{tpu_custom_call.1} parent=1 // pred_check
      %p52 = pneg %p35
    $region23: #{tpu_custom_call.1} parent=1 // pred_check_branch
      %54 = sbr.rel (%p52) target = $region25
    $region24: #{tpu_custom_call.1} parent=1 // pred_region
      %v55 = vld [vmem:[#allocation2] sm:$0xff]
      %56 = vadd.xlane.f32.xlu0 %v55
      %v57 = vpop.xlane.xlu0 %56
      %vm58 = vcmask 7168
      %59 = vst.msk [vmem:[%s2] sm:$0xff] %vm58, %v57
    $region25: #{tpu_custom_call.1} parent=1 // pred_fallthru
      _
    // Predicated region
    $region26: #{tpu_custom_call.1} parent=1 // pred_check
      _
    $region27: #{tpu_custom_call.1} parent=1 // pred_check_branch
      %61 = sbr.rel (0) target = $region29
    $region28: #{tpu_custom_call.1} parent=1 // pred_region
      _
    $region29: #{tpu_custom_call.1} parent=1 // pred_fallthru
      _
    // Predicated region
    $region30: #{tpu_custom_call.1} parent=1 // pred_check
      _
    $region31: #{tpu_custom_call.1} parent=1 // pred_check_branch
      %63 = sbr.rel (0) target = $region33
    $region32: #{tpu_custom_call.1} parent=1 // pred_region
      _
    $region33: #{tpu_custom_call.1} parent=1 // pred_fallthru
      _
    %64 = vsyncpa [#allocation4], 1
    %65 = vsyncpa [#allocation6], 1

</llo_original>
